<compile_context>
chip_gen: v5e
topology: v5e:2x2
jax: 0.10.0
libtpu: 0.0.40
codegen_flags: <defaults>
</compile_context>

<pallas_src>
import jax
import jax.numpy as jnp
from jax.experimental import pallas as pl
from jax.experimental.pallas import tpu as pltpu

IN_FEATURES = 28 * 28      # 784
HIDDEN = 256
NUM_CLASSES = 10
N_PAD = 128                # lane-dense padded class dim


def _round_up(n, m):
    return ((n + m - 1) // m) * m


def ffn_kernel(x_ref, w1_ref, b1_ref, w2_ref, b2_ref, o_ref):
    # x_ref:  (TB, 784) f32       w1_ref: (784, 256) bf16   b1_ref: (1, 256) f32
    # w2_ref: (256, 128) bf16     b2_ref: (1, 128)  f32     o_ref:  (TB, 128) f32
    # Hidden layer: cast activations to bf16 on the fly, f32 accumulate.
    x = x_ref[...].astype(jnp.bfloat16)
    h = jnp.dot(x, w1_ref[...], preferred_element_type=jnp.float32)
    h = jnp.maximum(h + b1_ref[...], 0.0)

    # Output layer (padded to 128 lanes, unmasked MXU pass / stores).
    # Padded class lanes: w2 columns are zero and b2 carries -1e30, so the
    # padded logits are -1e30 and exp() makes them exactly 0 in the softmax.
    logits = jnp.dot(h.astype(jnp.bfloat16), w2_ref[...],
                     preferred_element_type=jnp.float32) + b2_ref[...]

    # Numerically stable softmax over classes (f32, exact normalization).
    m = jnp.max(logits, axis=-1, keepdims=True)
    e = jnp.exp(logits - m)
    denom = jnp.sum(e, axis=-1, keepdims=True)
    o_ref[...] = (e / denom).astype(o_ref.dtype)


def _choose_tb(B, tb_max, min_steps=2):
    """Batch tile: multiple of 8 sublanes, >= min_steps grid steps when
    possible (v7x megacore), capped at tb_max for VMEM headroom."""
    num_steps = max(min_steps, pl.cdiv(B, tb_max))
    tb = _round_up(pl.cdiv(B, num_steps), 8)
    return max(8, min(tb, min(tb_max, _round_up(B, 8))))


def feed_forward_net(x_nchw, w1, b1, w2, b2, *, tb_max=1024):
    """x_nchw: (B, 1, 28, 28) float32 -> (B, 10) softmax probabilities."""
    B = x_nchw.shape[0]
    # nn.Flatten(): flatten all dims but batch (row-major, matches NCHW).
    x2d = x_nchw.reshape(B, -1).astype(jnp.float32)           # (B, 784), no pad/cast

    # Weights: resident in VMEM, bf16 for the MXU; biases stay f32.
    w1_p = w1.astype(jnp.bfloat16)                            # (784, 256)
    b1_p = b1.reshape(1, HIDDEN).astype(jnp.float32)          # (1, 256)
    w2_p = jnp.zeros((HIDDEN, N_PAD), jnp.float32).at[:, :NUM_CLASSES].set(w2)
    w2_p = w2_p.astype(jnp.bfloat16)                          # (256, 128)
    # Fold the class mask into the bias: padded lanes -> -1e30 (finite).
    b2_p = jnp.full((1, N_PAD), -1e30, jnp.float32).at[0, :NUM_CLASSES].set(b2)

    tb = _choose_tb(B, tb_max)
    grid = (pl.cdiv(B, tb),)

    cost = pl.CostEstimate(
        flops=2 * B * (IN_FEATURES * HIDDEN + HIDDEN * N_PAD),
        transcendentals=B * N_PAD,
        bytes_accessed=(B * IN_FEATURES * 4                      # x (f32)
                        + IN_FEATURES * HIDDEN * 2 + HIDDEN * 4  # w1, b1
                        + HIDDEN * N_PAD * 2 + N_PAD * 4         # w2, b2
                        + B * N_PAD * 4),                        # out
    )

    out = pl.pallas_call(
        ffn_kernel,
        out_shape=jax.ShapeDtypeStruct((B, N_PAD), jnp.float32),
        grid=grid,
        in_specs=[
            pl.BlockSpec((tb, IN_FEATURES), lambda i: (i, 0)),   # x: tiled over batch
            pl.BlockSpec((IN_FEATURES, HIDDEN), lambda i: (0, 0)),  # w1: resident
            pl.BlockSpec((1, HIDDEN), lambda i: (0, 0)),         # b1: resident
            pl.BlockSpec((HIDDEN, N_PAD), lambda i: (0, 0)),     # w2: resident
            pl.BlockSpec((1, N_PAD), lambda i: (0, 0)),          # b2: resident
        ],
        out_specs=pl.BlockSpec((tb, N_PAD), lambda i: (i, 0)),
        compiler_params=pltpu.CompilerParams(
            dimension_semantics=("parallel",)),
        cost_estimate=cost,
    )(x2d, w1_p, b1_p, w2_p, b2_p)

    return out[:B, :NUM_CLASSES]


def init_params(key):
    """Deterministic init mimicking PyTorch nn.Linear defaults U(-1/sqrt(fan_in), 1/sqrt(fan_in))."""
    k1, k2, k3, k4 = jax.random.split(key, 4)
    lim1 = 1.0 / jnp.sqrt(jnp.float32(IN_FEATURES))
    lim2 = 1.0 / jnp.sqrt(jnp.float32(HIDDEN))
    # Stored transposed relative to PyTorch: (in_features, out_features).
    w1 = jax.random.uniform(k1, (IN_FEATURES, HIDDEN), jnp.float32, -lim1, lim1)
    b1 = jax.random.uniform(k2, (HIDDEN,), jnp.float32, -lim1, lim1)
    w2 = jax.random.uniform(k3, (HIDDEN, NUM_CLASSES), jnp.float32, -lim2, lim2)
    b2 = jax.random.uniform(k4, (NUM_CLASSES,), jnp.float32, -lim2, lim2)
    return w1, b1, w2, b2


if __name__ == "__main__":
    key = jax.random.PRNGKey(0)
    k_x, k_p = jax.random.split(key)

    B = 2
    x = jax.random.normal(k_x, (B, 1, 28, 28), jnp.float32)  # NCHW, like MNIST
    w1, b1, w2, b2 = init_params(k_p)

    out = feed_forward_net(x, w1, b1, w2, b2)
    out = jax.block_until_ready(out)
    assert out.shape == (B, NUM_CLASSES)

    # Reference in plain JAX (f32). Kernel uses bf16 MXU inputs, so tolerance
    # is loosened accordingly.
    ref_h = jnp.maximum(x.reshape(B, -1) @ w1 + b1, 0.0)
    ref_logits = ref_h @ w2 + b2
    ref = jax.nn.softmax(ref_logits, axis=1)
    assert jnp.allclose(out, ref, atol=2e-2), "mismatch vs f32 reference"
    # Exact f32 normalization inside the kernel -> rows sum to 1.
    assert jnp.allclose(jnp.sum(out, axis=1), 1.0, atol=1e-3)

    print("KERNEL_OK")
</pallas_src>

<mosaic_0001>
module attributes {stable_mosaic.version = 11 : i64} {
  func.func @ffn_kernel(%arg0: i32, %arg1: memref<8x784xf32, #tpu.memory_space<vmem>>, %arg2: memref<784x256xbf16, #tpu.memory_space<vmem>>, %arg3: memref<1x256xf32, #tpu.memory_space<vmem>>, %arg4: memref<256x128xbf16, #tpu.memory_space<vmem>>, %arg5: memref<1x128xf32, #tpu.memory_space<vmem>>, %arg6: memref<8x128xf32, #tpu.memory_space<vmem>>) attributes {dimension_semantics = [#tpu.dimension_semantics<parallel>], iteration_bounds = array<i64: 1>, scalar_prefetch = 0 : i64, scratch_operands = 0 : i64, tpu.core_type = #tpu.core_type<tc>, window_params = [{transform_indices = @transform_0, window_bounds = array<i64: 8, 784>}, {pipeline_mode = #tpu.pipeline_mode<synchronous>, transform_indices = @transform_1, window_bounds = array<i64: 784, 256>}, {pipeline_mode = #tpu.pipeline_mode<synchronous>, transform_indices = @transform_2, window_bounds = array<i64: 1, 256>}, {pipeline_mode = #tpu.pipeline_mode<synchronous>, transform_indices = @transform_3, window_bounds = array<i64: 256, 128>}, {pipeline_mode = #tpu.pipeline_mode<synchronous>, transform_indices = @transform_4, window_bounds = array<i64: 1, 128>}, {transform_indices = @transform_5, window_bounds = array<i64: 8, 128>}]} {
    %c0 = arith.constant 0 : index
    %c0_0 = arith.constant 0 : index
    %0 = vector.load %arg1[%c0, %c0_0] : memref<8x784xf32, #tpu.memory_space<vmem>>, vector<8x784xf32>
    %1 = arith.truncf %0 : vector<8x784xf32> to vector<8x784xbf16>
    %c0_1 = arith.constant 0 : index
    %c0_2 = arith.constant 0 : index
    %2 = vector.load %arg2[%c0_1, %c0_2] : memref<784x256xbf16, #tpu.memory_space<vmem>>, vector<784x256xbf16>
    %cst = arith.constant dense<0.000000e+00> : vector<8x256xf32>
    %3 = tpu.matmul %1, %2, %cst {dimension_numbers = #tpu.dot_dimension_numbers<[1], [0], [0], [1], [0, 0, 1, 1], [], []>} : vector<8x784xbf16>, vector<784x256xbf16>, vector<8x256xf32> -> vector<8x256xf32>
    %c0_3 = arith.constant 0 : index
    %c0_4 = arith.constant 0 : index
    %4 = vector.load %arg3[%c0_3, %c0_4] : memref<1x256xf32, #tpu.memory_space<vmem>>, vector<1x256xf32>
    %5 = vector.broadcast %4 : vector<1x256xf32> to vector<8x256xf32>
    %6 = arith.addf %3, %5 : vector<8x256xf32>
    %cst_5 = arith.constant 0.000000e+00 : f32
    %7 = vector.broadcast %cst_5 : f32 to vector<8x256xf32>
    %8 = arith.maximumf %6, %7 : vector<8x256xf32>
    %9 = arith.truncf %8 : vector<8x256xf32> to vector<8x256xbf16>
    %c0_6 = arith.constant 0 : index
    %c0_7 = arith.constant 0 : index
    %10 = vector.load %arg4[%c0_6, %c0_7] : memref<256x128xbf16, #tpu.memory_space<vmem>>, vector<256x128xbf16>
    %cst_8 = arith.constant dense<0.000000e+00> : vector<8x128xf32>
    %11 = tpu.matmul %9, %10, %cst_8 {dimension_numbers = #tpu.dot_dimension_numbers<[1], [0], [0], [1], [0, 0, 1, 1], [], []>} : vector<8x256xbf16>, vector<256x128xbf16>, vector<8x128xf32> -> vector<8x128xf32>
    %c0_9 = arith.constant 0 : index
    %c0_10 = arith.constant 0 : index
    %12 = vector.load %arg5[%c0_9, %c0_10] : memref<1x128xf32, #tpu.memory_space<vmem>>, vector<1x128xf32>
    %13 = vector.broadcast %12 : vector<1x128xf32> to vector<8x128xf32>
    %14 = arith.addf %11, %13 : vector<8x128xf32>
    %cst_11 = arith.constant dense<0xFF800000> : vector<8xf32>
    %15 = vector.multi_reduction <maximumf>, %14, %cst_11 [1] : vector<8x128xf32> to vector<8xf32>
    %16 = vector.shape_cast %15 : vector<8xf32> to vector<8x1xf32>
    %17 = vector.broadcast %16 : vector<8x1xf32> to vector<8x128xf32>
    %18 = arith.subf %14, %17 : vector<8x128xf32>
    %19 = math.exp %18 : vector<8x128xf32>
    %cst_12 = arith.constant dense<0.000000e+00> : vector<8xf32>
    %20 = vector.multi_reduction <add>, %19, %cst_12 [1] : vector<8x128xf32> to vector<8xf32>
    %21 = vector.shape_cast %20 : vector<8xf32> to vector<8x1xf32>
    %22 = vector.broadcast %21 : vector<8x1xf32> to vector<8x128xf32>
    %23 = arith.divf %19, %22 : vector<8x128xf32>
    %c0_13 = arith.constant 0 : index
    %c0_14 = arith.constant 0 : index
    %24 = vector.load %arg6[%c0_13, %c0_14] : memref<8x128xf32, #tpu.memory_space<vmem>>, vector<8x128xf32>
    tpu.vector_store %arg6[%c0_13, %c0_14], %23 {strides = array<i32>} : memref<8x128xf32, #tpu.memory_space<vmem>>, vector<8x128xf32>,
    return
  }
  func.func @transform_0(%arg0: i32) -> (i32, i32) {
    %c0_i32 = arith.constant 0 : i32
    %c0_i32_0 = arith.constant 0 : i32
    return %arg0, %c0_i32 : i32, i32
  }
  func.func @transform_1(%arg0: i32) -> (i32, i32) {
    %c0_i32 = arith.constant 0 : i32
    %c0_i32_0 = arith.constant 0 : i32
    %c0_i32_1 = arith.constant 0 : i32
    return %c0_i32, %c0_i32_0 : i32, i32
  }
  func.func @transform_2(%arg0: i32) -> (i32, i32) {
    %c0_i32 = arith.constant 0 : i32
    %c0_i32_0 = arith.constant 0 : i32
    %c0_i32_1 = arith.constant 0 : i32
    return %c0_i32, %c0_i32_0 : i32, i32
  }
  func.func @transform_3(%arg0: i32) -> (i32, i32) {
    %c0_i32 = arith.constant 0 : i32
    %c0_i32_0 = arith.constant 0 : i32
    %c0_i32_1 = arith.constant 0 : i32
    return %c0_i32, %c0_i32_0 : i32, i32
  }
  func.func @transform_4(%arg0: i32) -> (i32, i32) {
    %c0_i32 = arith.constant 0 : i32
    %c0_i32_0 = arith.constant 0 : i32
    %c0_i32_1 = arith.constant 0 : i32
    return %c0_i32, %c0_i32_0 : i32, i32
  }
  func.func @transform_5(%arg0: i32) -> (i32, i32) {
    %c0_i32 = arith.constant 0 : i32
    %c0_i32_0 = arith.constant 0 : i32
    return %arg0, %c0_i32 : i32, i32
  }
}

</mosaic_0001>

<llo_original>
// kernel: tpu_custom_call.1
$region0: #{tpu_custom_call.1}
  #allocation0 [shape = 'u32[]', space=smem, size = 0x4, offset = 0x4, fixed_abs, tag = 'smem constant byte address 0x4 - core index']
  #allocation1 [shape = 'u32[72,128]{1,0:T(1,128)}', space=vmem, size = 0x9000, scoped, tag = 'internal scratch']
  %s0 = inlined_call_operand.hbm [shape: f32[2,784], index: 0, kind: input, shape index: {}]
  %s1 = inlined_call_operand.hbm [shape: bf16[784,256], index: 1, kind: input, shape index: {}]
  %s2 = inlined_call_operand.hbm [shape: f32[1,256], index: 2, kind: input, shape index: {}]
  %s3 = inlined_call_operand.hbm [shape: bf16[256,128], index: 3, kind: input, shape index: {}]
  %s4 = inlined_call_operand.vmem [shape: f32[1,128], index: 4, kind: input, shape index: {}]
  %s5 = inlined_call_operand.hbm [shape: f32[2,128], index: 5, kind: output, shape index: {}]
  %s6 = sld [smem:[#allocation0]]
  $region46: #{tpu_custom_call.1} parent=0
    _
  %s8 = ssub.s32 1, %s6
  %s9 = scalar_select 0, %s8, %s6
  $region1: #{tpu_custom_call.1} parent=0
    #allocation2 [shape = 'u8[28672]{0}', space=vmem, size = 0x7000, scoped, tag = 'input window, operand 0, single buffered']
    #allocation3 [shape = 's32[1]{0}', space=sflag, size = 0x4, scoped, tag = 'scoped memory for tpu_custom_call.1']
    #allocation4 [shape = 's32[1]{0}', space=sflag, size = 0x4, scoped, tag = 'scoped memory for tpu_custom_call.1']
    #allocation5 [shape = 'u8[401408]{0}', space=vmem, size = 0x62000, scoped, tag = 'input window, operand 1, single buffered']
    #allocation6 [shape = 's32[1]{0}', space=sflag, size = 0x4, scoped, tag = 'scoped memory for tpu_custom_call.1']
    #allocation7 [shape = 'u8[1024]{0}', space=vmem, size = 0x400, scoped, tag = 'input window, operand 2, single buffered']
    #allocation8 [shape = 'u8[65536]{0}', space=vmem, size = 0x10000, scoped, tag = 'input window, operand 3, single buffered']
    #allocation9 [shape = 's32[1]{0}', space=sflag, size = 0x4, scoped, tag = 'scoped memory for tpu_custom_call.1']
    #allocation10 [shape = 'u8[4096]{0}', space=vmem, size = 0x1000, scoped, tag = 'output window, operand 0, single buffered']
    %10 = vsyncpa [#allocation3], 0
    %11 = vsyncpa [#allocation6], 0
    %12 = vsyncpa [#allocation9], 0
    %13 = vsyncpa [#allocation4], 0
    // Predicated region
    $region2: #{tpu_custom_call.1} parent=1 // pred_check
      _
    $region3: #{tpu_custom_call.1} parent=1 // pred_check_branch
      %15 = sbr.rel (0) target = $region5
    $region4: #{tpu_custom_call.1} parent=1 // pred_region
      %17 = vsyncadd [#allocation3], 672
      %s18 = sshll.u32 %s0, 4
      %s19 = int_to_ptr.hbm [resolvable:$true] %s18
      %s20 = sshll.u32 [#allocation2], 4
      %s21 = int_to_ptr.vmem [resolvable:$true] %s20
      %26 = dma.hbm_to_vmem [thread:$0]  %s19, 224, %s21, [#allocation3], 224, 224, 14
    $region5: #{tpu_custom_call.1} parent=1 // pred_fallthru
      _
    // Predicated region
    $region6: #{tpu_custom_call.1} parent=1 // pred_check
      _
    $region7: #{tpu_custom_call.1} parent=1 // pred_check_branch
      %28 = sbr.rel (0) target = $region9
    $region8: #{tpu_custom_call.1} parent=1 // pred_region
      %30 = vsyncadd [#allocation6], 0
      %s31 = sshll.u32 %s1, 4
      %s32 = int_to_ptr.hbm [resolvable:$true] %s31
      %s33 = sshll.u32 [#allocation5], 4
      %s34 = int_to_ptr.vmem [resolvable:$true] %s33
      %39 = dma.hbm_to_vmem [thread:$0]  %s32, 12544, %s34, [#allocation6], 128, 128, 8
    $region9: #{tpu_custom_call.1} parent=1 // pred_fallthru
      _
    // Predicated region
    $region10: #{tpu_custom_call.1} parent=1 // pred_check
      _
    $region11: #{tpu_custom_call.1} parent=1 // pred_check_branch
      %41 = sbr.rel (0) target = $region13
    $region12: #{tpu_custom_call.1} parent=1 // pred_region
      %43 = vsyncadd [#allocation6], 0
      %s45 = sshll.u32 %s2, 4
      %s46 = int_to_ptr.hbm [resolvable:$true] %s45
      %s47 = sshll.u32 [#allocation7], 4
      %s48 = int_to_ptr.vmem [resolvable:$true] %s47
      %50 = dma.hbm_to_vmem [thread:$0]  %s46, 32, %s48, [#allocation6]
    $region13: #{tpu_custom_call.1} parent=1 // pred_fallthru
      _
    // Predicated region
    $region14: #{tpu_custom_call.1} parent=1 // pred_check
      _
    $region15: #{tpu_custom_call.1} parent=1 // pred_check_branch
      %52 = sbr.rel (0) target = $region17
    $region16: #{tpu_custom_call.1} parent=1 // pred_region
      %54 = vsyncadd [#allocation9], 0
      %s55 = sshll.u32 %s3, 4
      %s56 = int_to_ptr.hbm [resolvable:$true] %s55
      %s57 = sshll.u32 [#allocation8], 4
      %s58 = int_to_ptr.vmem [resolvable:$true] %s57
      %63 = dma.hbm_to_vmem [thread:$0]  %s56, 2048, %s58, [#allocation9], 64, 64, 4
    $region17: #{tpu_custom_call.1} parent=1 // pred_fallthru
      _
    // Predicated region
    $region18: #{tpu_custom_call.1} parent=1 // pred_check
      _
    $region19: #{tpu_custom_call.1} parent=1 // pred_check_branch
      %65 = sbr.rel (0) target = $region21
    $region20: #{tpu_custom_call.1} parent=1 // pred_region
      _
    $region21: #{tpu_custom_call.1} parent=1 // pred_fallthru
      _
    // Predicated region
    $region22: #{tpu_custom_call.1} parent=1 // pred_check
      _
    $region23: #{tpu_custom_call.1} parent=1 // pred_check_branch
      %67 = sbr.rel (0) target = $region25
    $region24: #{tpu_custom_call.1} parent=1 // pred_region
      %69 = dma.done [#allocation3], 896
    $region25: #{tpu_custom_call.1} parent=1 // pred_fallthru
      _
    // Predicated region
    $region26: #{tpu_custom_call.1} parent=1 // pred_check
      _
    $region27: #{tpu_custom_call.1} parent=1 // pred_check_branch
      %71 = sbr.rel (0) target = $region29
    $region28: #{tpu_custom_call.1} parent=1 // pred_region
      %73 = dma.done [#allocation6], 12544
    $region29: #{tpu_custom_call.1} parent=1 // pred_fallthru
      _
    // Predicated region
    $region30: #{tpu_custom_call.1} parent=1 // pred_check
      _
    $region31: #{tpu_custom_call.1} parent=1 // pred_check_branch
      %75 = sbr.rel (0) target = $region33
    $region32: #{tpu_custom_call.1} parent=1 // pred_region
      %77 = dma.done [#allocation6], 32
    $region33: #{tpu_custom_call.1} parent=1 // pred_fallthru
      _
    // Predicated region
    $region34: #{tpu_custom_call.1} parent=1 // pred_check
      _
    $region35: #{tpu_custom_call.1} parent=1 // pred_check_branch
      %79 = sbr.rel (0) target = $region37
    $region36: #{tpu_custom_call.1} parent=1 // pred_region
      %81 = dma.done [#allocation9], 2048
    $region37: #{tpu_custom_call.1} parent=1 // pred_fallthru
      _
    %v83 = vld [vmem:[#allocation2] sm:$0xff]
    %v84 = vld [vmem:[#allocation2 + $0x8] sm:$0x3f]
    %v85 = vld [vmem:[#allocation2 + $0xe] sm:$0xff]
    %v86 = vld [vmem:[#allocation2 + $0x16] sm:$0x3f]
    %v87 = vld [vmem:[#allocation2 + $0x1c] sm:$0xff]
    %v88 = vld [vmem:[#allocation2 + $0x24] sm:$0x3f]
    %v89 = vld [vmem:[#allocation2 + $0x2a] sm:$0xff]
    %v90 = vld [vmem:[#allocation2 + $0x32] sm:$0x3f]
    %99 = vst [vmem:[#allocation1] ss:$4 sm:$0xff] %v83
    %s100 = scalar_lea.vmem [#allocation1], 1
    %101 = vst [vmem:[%s100] ss:$4 sm:$0xff] %v85
    %s102 = scalar_lea.vmem [#allocation1], 2
    %103 = vst [vmem:[%s102] ss:$4 sm:$0xff] %v87
    %s104 = scalar_lea.vmem [#allocation1], 3
    %105 = vst [vmem:[%s104] ss:$4 sm:$0xff] %v89
    %s106 = scalar_lea.vmem [#allocation1], 32
    %107 = vst [vmem:[%s106] ss:$4 sm:$0xff] %v84
    %s108 = scalar_lea.vmem [#allocation1], 33
    %109 = vst [vmem:[%s108] ss:$4 sm:$0xff] %v86
    %s110 = scalar_lea.vmem [#allocation1], 34
    %111 = vst [vmem:[%s110] ss:$4 sm:$0xff] %v88
    %s112 = scalar_lea.vmem [#allocation1], 35
    %113 = vst [vmem:[%s112] ss:$4 sm:$0xff] %v90
    %v114 = vld.sshfl [vmem:[#allocation1] sm:$0xff pattern:$0x73625140]
    %v115 = vld.sshfl [vmem:[#allocation1 + $0x8] sm:$0xff pattern:$0x73625140]
    %v116 = vld.sshfl [vmem:[#allocation1 + $0x10] sm:$0xff pattern:$0x73625140]
    %v117 = vld.sshfl [vmem:[#allocation1 + $0x18] sm:$0xff pattern:$0x73625140]
    %v118 = vld.sshfl [vmem:[#allocation1 + $0x20] sm:$0xff pattern:$0x73625140]
    %v119 = vld.sshfl [vmem:[#allocation1 + $0x28] sm:$0xff pattern:$0x73625140]
    %v120 = vld.sshfl [vmem:[#allocation1 + $0x30] sm:$0xff pattern:$0x73625140]
    %v128 = vpack.c.bf16 %v114, %v114
    %v129 = vpack.c.bf16 %v115, %v115
    %v130 = vpack.c.bf16 %v116, %v116
    %v131 = vpack.c.bf16 %v117, %v117
    %v132 = vpack.c.bf16 %v118, %v118
    %v133 = vpack.c.bf16 %v119, %v119
    %v134 = vpack.c.bf16 %v120, %v120
    %v135 = vld [vmem:[#allocation5] sm:$0xff]
    %v136 = vld [vmem:[#allocation5 + $0x8] sm:$0xff]
    %v137 = vld [vmem:[#allocation5 + $0x10] sm:$0xff]
    %v138 = vld [vmem:[#allocation5 + $0x18] sm:$0xff]
    %v139 = vld [vmem:[#allocation5 + $0x20] sm:$0xff]
    %v140 = vld [vmem:[#allocation5 + $0x28] sm:$0xff]
    %v141 = vld [vmem:[#allocation5 + $0x30] sm:$0xff]
    %v142 = vld [vmem:[#allocation5 + $0x38] sm:$0xff]
    %v143 = vld [vmem:[#allocation5 + $0x40] sm:$0xff]
    %v144 = vld [vmem:[#allocation5 + $0x48] sm:$0xff]
    %v145 = vld [vmem:[#allocation5 + $0x50] sm:$0xff]
    %v146 = vld [vmem:[#allocation5 + $0x58] sm:$0xff]
    %v147 = vld [vmem:[#allocation5 + $0x60] sm:$0xff]
    %v148 = vld [vmem:[#allocation5 + $0x68] sm:$0xff]
    %v149 = vld [vmem:[#allocation5 + $0x70] sm:$0xff]
    %v150 = vld [vmem:[#allocation5 + $0x78] sm:$0xff]
    %v151 = vld [vmem:[#allocation5 + $0x80] sm:$0xff]
    %v152 = vld [vmem:[#allocation5 + $0x88] sm:$0xff]
    %v153 = vld [vmem:[#allocation5 + $0x90] sm:$0xff]
    %v154 = vld [vmem:[#allocation5 + $0x98] sm:$0xff]
    %v155 = vld [vmem:[#allocation5 + $0xa0] sm:$0xff]
    %v156 = vld [vmem:[#allocation5 + $0xa8] sm:$0xff]
    %v157 = vld [vmem:[#allocation5 + $0xb0] sm:$0xff]
    %v158 = vld [vmem:[#allocation5 + $0xb8] sm:$0xff]
    %v159 = vld [vmem:[#allocation5 + $0xc0] sm:$0xff]
    %v160 = vld [vmem:[#allocation5 + $0xc8] sm:$0xff]
    %v161 = vld [vmem:[#allocation5 + $0xd0] sm:$0xff]
    %v162 = vld [vmem:[#allocation5 + $0xd8] sm:$0xff]
    %v163 = vld [vmem:[#allocation5 + $0xe0] sm:$0xff]
    %v164 = vld [vmem:[#allocation5 + $0xe8] sm:$0xff]
    %v165 = vld [vmem:[#allocation5 + $0xf0] sm:$0xff]
    %v166 = vld [vmem:[#allocation5 + $0xf8] sm:$0xff]
    %v167 = vld [vmem:[#allocation5 + $0x100] sm:$0xff]
    %v168 = vld [vmem:[#allocation5 + $0x108] sm:$0xff]
    %v169 = vld [vmem:[#allocation5 + $0x110] sm:$0xff]
    %v170 = vld [vmem:[#allocation5 + $0x118] sm:$0xff]
    %v171 = vld [vmem:[#allocation5 + $0x120] sm:$0xff]
    %v172 = vld [vmem:[#allocation5 + $0x128] sm:$0xff]
    %v173 = vld [vmem:[#allocation5 + $0x130] sm:$0xff]
    %v174 = vld [vmem:[#allocation5 + $0x138] sm:$0xff]
    %v175 = vld [vmem:[#allocation5 + $0x140] sm:$0xff]
    %v176 = vld [vmem:[#allocation5 + $0x148] sm:$0xff]
    %v177 = vld [vmem:[#allocation5 + $0x150] sm:$0xff]
    %v178 = vld [vmem:[#allocation5 + $0x158] sm:$0xff]
    %v179 = vld [vmem:[#allocation5 + $0x160] sm:$0xff]
    %v180 = vld [vmem:[#allocation5 + $0x168] sm:$0xff]
    %v181 = vld [vmem:[#allocation5 + $0x170] sm:$0xff]
    %v182 = vld [vmem:[#allocation5 + $0x178] sm:$0xff]
    %v183 = vld [vmem:[#allocation5 + $0x180] sm:$0xff]
    %v184 = vld [vmem:[#allocation5 + $0x188] sm:$0xff]
    %v185 = vld [vmem:[#allocation5 + $0x190] sm:$0xff]
    %v186 = vld [vmem:[#allocation5 + $0x198] sm:$0xff]
    %v187 = vld [vmem:[#allocation5 + $0x1a0] sm:$0xff]
    %v188 = vld [vmem:[#allocation5 + $0x1a8] sm:$0xff]
    %v189 = vld [vmem:[#allocation5 + $0x1b0] sm:$0xff]
    %v190 = vld [vmem:[#allocation5 + $0x1b8] sm:$0xff]
    %v191 = vld [vmem:[#allocation5 + $0x1c0] sm:$0xff]
    %v192 = vld [vmem:[#allocation5 + $0x1c8] sm:$0xff]
    %v193 = vld [vmem:[#allocation5 + $0x1d0] sm:$0xff]
    %v194 = vld [vmem:[#allocation5 + $0x1d8] sm:$0xff]
    %v195 = vld [vmem:[#allocation5 + $0x1e0] sm:$0xff]
    %v196 = vld [vmem:[#allocation5 + $0x1e8] sm:$0xff]
    %v197 = vld [vmem:[#allocation5 + $0x1f0] sm:$0xff]
    %v198 = vld [vmem:[#allocation5 + $0x1f8] sm:$0xff]
    %v199 = vld [vmem:[#allocation5 + $0x200] sm:$0xff]
    %v200 = vld [vmem:[#allocation5 + $0x208] sm:$0xff]
    %v201 = vld [vmem:[#allocation5 + $0x210] sm:$0xff]
    %v202 = vld [vmem:[#allocation5 + $0x218] sm:$0xff]
    %v203 = vld [vmem:[#allocation5 + $0x220] sm:$0xff]
    %v204 = vld [vmem:[#allocation5 + $0x228] sm:$0xff]
    %v205 = vld [vmem:[#allocation5 + $0x230] sm:$0xff]
    %v206 = vld [vmem:[#allocation5 + $0x238] sm:$0xff]
    %v207 = vld [vmem:[#allocation5 + $0x240] sm:$0xff]
    %v208 = vld [vmem:[#allocation5 + $0x248] sm:$0xff]
    %v209 = vld [vmem:[#allocation5 + $0x250] sm:$0xff]
    %v210 = vld [vmem:[#allocation5 + $0x258] sm:$0xff]
    %v211 = vld [vmem:[#allocation5 + $0x260] sm:$0xff]
    %v212 = vld [vmem:[#allocation5 + $0x268] sm:$0xff]
    %v213 = vld [vmem:[#allocation5 + $0x270] sm:$0xff]
    %v214 = vld [vmem:[#allocation5 + $0x278] sm:$0xff]
    %v215 = vld [vmem:[#allocation5 + $0x280] sm:$0xff]
    %v216 = vld [vmem:[#allocation5 + $0x288] sm:$0xff]
    %v217 = vld [vmem:[#allocation5 + $0x290] sm:$0xff]
    %v218 = vld [vmem:[#allocation5 + $0x298] sm:$0xff]
    %v219 = vld [vmem:[#allocation5 + $0x2a0] sm:$0xff]
    %v220 = vld [vmem:[#allocation5 + $0x2a8] sm:$0xff]
    %v221 = vld [vmem:[#allocation5 + $0x2b0] sm:$0xff]
    %v222 = vld [vmem:[#allocation5 + $0x2b8] sm:$0xff]
    %v223 = vld [vmem:[#allocation5 + $0x2c0] sm:$0xff]
    %v224 = vld [vmem:[#allocation5 + $0x2c8] sm:$0xff]
    %v225 = vld [vmem:[#allocation5 + $0x2d0] sm:$0xff]
    %v226 = vld [vmem:[#allocation5 + $0x2d8] sm:$0xff]
    %v227 = vld [vmem:[#allocation5 + $0x2e0] sm:$0xff]
    %v228 = vld [vmem:[#allocation5 + $0x2e8] sm:$0xff]
    %v229 = vld [vmem:[#allocation5 + $0x2f0] sm:$0xff]
    %v230 = vld [vmem:[#allocation5 + $0x2f8] sm:$0xff]
    %v231 = vld [vmem:[#allocation5 + $0x300] sm:$0xff]
    %v232 = vld [vmem:[#allocation5 + $0x308] sm:$0xff]
    %v233 = vld [vmem:[#allocation7] sm:$0x3]
    %v235 = vperm.slane %v233, 0
    %v236 = vperm.slane %v233, 1
    %v337 = vunpack.c.l.b16 %v135
    %v338 = vunpack.c.h.b16 %v135
    %v339 = vunpack.c.l.b16 %v136
    %v340 = vunpack.c.h.b16 %v136
    %v341 = vunpack.c.l.b16 %v137
    %v342 = vunpack.c.h.b16 %v137
    %v343 = vunpack.c.l.b16 %v138
    %v344 = vunpack.c.h.b16 %v138
    %v345 = vunpack.c.l.b16 %v139
    %v346 = vunpack.c.h.b16 %v139
    %v347 = vunpack.c.l.b16 %v140
    %v348 = vunpack.c.h.b16 %v140
    %v349 = vunpack.c.l.b16 %v141
    %v350 = vunpack.c.h.b16 %v141
    %v351 = vunpack.c.l.b16 %v142
    %v352 = vunpack.c.h.b16 %v142
    %v353 = vunpack.c.l.b16 %v143
    %v354 = vunpack.c.h.b16 %v143
    %v355 = vunpack.c.l.b16 %v144
    %v356 = vunpack.c.h.b16 %v144
    %v357 = vunpack.c.l.b16 %v145
    %v358 = vunpack.c.h.b16 %v145
    %v359 = vunpack.c.l.b16 %v146
    %v360 = vunpack.c.h.b16 %v146
    %v361 = vunpack.c.l.b16 %v147
    %v362 = vunpack.c.h.b16 %v147
    %v363 = vunpack.c.l.b16 %v148
    %v364 = vunpack.c.h.b16 %v148
    %v365 = vunpack.c.l.b16 %v149
    %v366 = vunpack.c.h.b16 %v149
    %v367 = vunpack.c.l.b16 %v150
    %v368 = vunpack.c.h.b16 %v150
    %v369 = vunpack.c.l.b16 %v151
    %v370 = vunpack.c.h.b16 %v151
    %v371 = vunpack.c.l.b16 %v152
    %v372 = vunpack.c.h.b16 %v152
    %v373 = vunpack.c.l.b16 %v153
    %v374 = vunpack.c.h.b16 %v153
    %v375 = vunpack.c.l.b16 %v154
    %v376 = vunpack.c.h.b16 %v154
    %v377 = vunpack.c.l.b16 %v155
    %v378 = vunpack.c.h.b16 %v155
    %v379 = vunpack.c.l.b16 %v156
    %v380 = vunpack.c.h.b16 %v156
    %v381 = vunpack.c.l.b16 %v157
    %v382 = vunpack.c.h.b16 %v157
    %v383 = vunpack.c.l.b16 %v158
    %v384 = vunpack.c.h.b16 %v158
    %v385 = vunpack.c.l.b16 %v159
    %v386 = vunpack.c.h.b16 %v159
    %v387 = vunpack.c.l.b16 %v160
    %v388 = vunpack.c.h.b16 %v160
    %v389 = vunpack.c.l.b16 %v161
    %v390 = vunpack.c.h.b16 %v161
    %v391 = vunpack.c.l.b16 %v162
    %v392 = vunpack.c.h.b16 %v162
    %v393 = vunpack.c.l.b16 %v163
    %v394 = vunpack.c.h.b16 %v163
    %v395 = vunpack.c.l.b16 %v164
    %v396 = vunpack.c.h.b16 %v164
    %v397 = vunpack.c.l.b16 %v165
    %v398 = vunpack.c.h.b16 %v165
    %v399 = vunpack.c.l.b16 %v166
    %v400 = vunpack.c.h.b16 %v166
    %v401 = vunpack.c.l.b16 %v167
    %v402 = vunpack.c.h.b16 %v167
    %v403 = vunpack.c.l.b16 %v168
    %v404 = vunpack.c.h.b16 %v168
    %v405 = vunpack.c.l.b16 %v169
    %v406 = vunpack.c.h.b16 %v169
    %v407 = vunpack.c.l.b16 %v170
    %v408 = vunpack.c.h.b16 %v170
    %v409 = vunpack.c.l.b16 %v171
    %v410 = vunpack.c.h.b16 %v171
    %v411 = vunpack.c.l.b16 %v172
    %v412 = vunpack.c.h.b16 %v172
    %v413 = vunpack.c.l.b16 %v173
    %v414 = vunpack.c.h.b16 %v173
    %v415 = vunpack.c.l.b16 %v174
    %v416 = vunpack.c.h.b16 %v174
    %v417 = vunpack.c.l.b16 %v175
    %v418 = vunpack.c.h.b16 %v175
    %v419 = vunpack.c.l.b16 %v176
    %v420 = vunpack.c.h.b16 %v176
    %v421 = vunpack.c.l.b16 %v177
    %v422 = vunpack.c.h.b16 %v177
    %v423 = vunpack.c.l.b16 %v178
    %v424 = vunpack.c.h.b16 %v178
    %v425 = vunpack.c.l.b16 %v179
    %v426 = vunpack.c.h.b16 %v179
    %v427 = vunpack.c.l.b16 %v180
    %v428 = vunpack.c.h.b16 %v180
    %v429 = vunpack.c.l.b16 %v181
    %v430 = vunpack.c.h.b16 %v181
    %v431 = vunpack.c.l.b16 %v182
    %v432 = vunpack.c.h.b16 %v182
    %v433 = vunpack.c.l.b16 %v183
    %v434 = vunpack.c.h.b16 %v183
    %v435 = vunpack.c.l.b16 %v184
    %v436 = vunpack.c.h.b16 %v184
    %v437 = vunpack.c.l.b16 %v185
    %v438 = vunpack.c.h.b16 %v185
    %v439 = vunpack.c.l.b16 %v186
    %v440 = vunpack.c.h.b16 %v186
    %v441 = vunpack.c.l.b16 %v187
    %v442 = vunpack.c.h.b16 %v187
    %v443 = vunpack.c.l.b16 %v188
    %v444 = vunpack.c.h.b16 %v188
    %v445 = vunpack.c.l.b16 %v189
    %v446 = vunpack.c.h.b16 %v189
    %v447 = vunpack.c.l.b16 %v190
    %v448 = vunpack.c.h.b16 %v190
    %v449 = vunpack.c.l.b16 %v191
    %v450 = vunpack.c.h.b16 %v191
    %v451 = vunpack.c.l.b16 %v192
    %v452 = vunpack.c.h.b16 %v192
    %v453 = vunpack.c.l.b16 %v193
    %v454 = vunpack.c.h.b16 %v193
    %v455 = vunpack.c.l.b16 %v194
    %v456 = vunpack.c.h.b16 %v194
    %v457 = vunpack.c.l.b16 %v195
    %v458 = vunpack.c.h.b16 %v195
    %v459 = vunpack.c.l.b16 %v196
    %v460 = vunpack.c.h.b16 %v196
    %v461 = vunpack.c.l.b16 %v197
    %v462 = vunpack.c.h.b16 %v197
    %v463 = vunpack.c.l.b16 %v198
    %v464 = vunpack.c.h.b16 %v198
    %v465 = vunpack.c.l.b16 %v199
    %v466 = vunpack.c.h.b16 %v199
    %v467 = vunpack.c.l.b16 %v200
    %v468 = vunpack.c.h.b16 %v200
    %v469 = vunpack.c.l.b16 %v201
    %v470 = vunpack.c.h.b16 %v201
    %v471 = vunpack.c.l.b16 %v202
    %v472 = vunpack.c.h.b16 %v202
    %v473 = vunpack.c.l.b16 %v203
    %v474 = vunpack.c.h.b16 %v203
    %v475 = vunpack.c.l.b16 %v204
    %v476 = vunpack.c.h.b16 %v204
    %v477 = vunpack.c.l.b16 %v205
    %v478 = vunpack.c.h.b16 %v205
    %v479 = vunpack.c.l.b16 %v206
    %v480 = vunpack.c.h.b16 %v206
    %v481 = vunpack.c.l.b16 %v207
    %v482 = vunpack.c.h.b16 %v207
    %v483 = vunpack.c.l.b16 %v208
    %v484 = vunpack.c.h.b16 %v208
    %v485 = vunpack.c.l.b16 %v209
    %v486 = vunpack.c.h.b16 %v209
    %v487 = vunpack.c.l.b16 %v210
    %v488 = vunpack.c.h.b16 %v210
    %v489 = vunpack.c.l.b16 %v211
    %v490 = vunpack.c.h.b16 %v211
    %v491 = vunpack.c.l.b16 %v212
    %v492 = vunpack.c.h.b16 %v212
    %v493 = vunpack.c.l.b16 %v213
    %v494 = vunpack.c.h.b16 %v213
    %v495 = vunpack.c.l.b16 %v214
    %v496 = vunpack.c.h.b16 %v214
    %v497 = vunpack.c.l.b16 %v215
    %v498 = vunpack.c.h.b16 %v215
    %v499 = vunpack.c.l.b16 %v216
    %v500 = vunpack.c.h.b16 %v216
    %v501 = vunpack.c.l.b16 %v217
    %v502 = vunpack.c.h.b16 %v217
    %v503 = vunpack.c.l.b16 %v218
    %v504 = vunpack.c.h.b16 %v218
    %v505 = vunpack.c.l.b16 %v219
    %v506 = vunpack.c.h.b16 %v219
    %v507 = vunpack.c.l.b16 %v220
    %v508 = vunpack.c.h.b16 %v220
    %v509 = vunpack.c.l.b16 %v221
    %v510 = vunpack.c.h.b16 %v221
    %v511 = vunpack.c.l.b16 %v222
    %v512 = vunpack.c.h.b16 %v222
    %v513 = vunpack.c.l.b16 %v223
    %v514 = vunpack.c.h.b16 %v223
    %v515 = vunpack.c.l.b16 %v224
    %v516 = vunpack.c.h.b16 %v224
    %v517 = vunpack.c.l.b16 %v225
    %v518 = vunpack.c.h.b16 %v225
    %v519 = vunpack.c.l.b16 %v226
    %v520 = vunpack.c.h.b16 %v226
    %v521 = vunpack.c.l.b16 %v227
    %v522 = vunpack.c.h.b16 %v227
    %v523 = vunpack.c.l.b16 %v228
    %v524 = vunpack.c.h.b16 %v228
    %v525 = vunpack.c.l.b16 %v229
    %v526 = vunpack.c.h.b16 %v229
    %v527 = vunpack.c.l.b16 %v230
    %v528 = vunpack.c.h.b16 %v230
    %v529 = vunpack.c.l.b16 %v231
    %v530 = vunpack.c.h.b16 %v231
    %v531 = vunpack.c.l.b16 %v232
    %v532 = vunpack.c.h.b16 %v232
    %v533 = vpack.c.b16 %v339, %v337
    %v534 = vpack.c.b16 %v340, %v338
    %v535 = vpack.c.b16 %v343, %v341
    %v536 = vpack.c.b16 %v344, %v342
    %v537 = vpack.c.b16 %v347, %v345
    %v538 = vpack.c.b16 %v348, %v346
    %v539 = vpack.c.b16 %v351, %v349
    %v540 = vpack.c.b16 %v352, %v350
    %v541 = vpack.c.b16 %v355, %v353
    %v542 = vpack.c.b16 %v356, %v354
    %v543 = vpack.c.b16 %v359, %v357
    %v544 = vpack.c.b16 %v360, %v358
    %v545 = vpack.c.b16 %v363, %v361
    %v546 = vpack.c.b16 %v364, %v362
    %v547 = vpack.c.b16 %v367, %v365
    %v548 = vpack.c.b16 %v368, %v366
    %v549 = vpack.c.b16 %v371, %v369
    %v550 = vpack.c.b16 %v372, %v370
    %v551 = vpack.c.b16 %v375, %v373
    %v552 = vpack.c.b16 %v376, %v374
    %v553 = vpack.c.b16 %v379, %v377
    %v554 = vpack.c.b16 %v380, %v378
    %v555 = vpack.c.b16 %v383, %v381
    %v556 = vpack.c.b16 %v384, %v382
    %v557 = vpack.c.b16 %v387, %v385
    %v558 = vpack.c.b16 %v388, %v386
    %v559 = vpack.c.b16 %v391, %v389
    %v560 = vpack.c.b16 %v392, %v390
    %v561 = vpack.c.b16 %v395, %v393
    %v562 = vpack.c.b16 %v396, %v394
    %v563 = vpack.c.b16 %v399, %v397
    %v564 = vpack.c.b16 %v400, %v398
    %v565 = vpack.c.b16 %v403, %v401
    %v566 = vpack.c.b16 %v404, %v402
    %v567 = vpack.c.b16 %v407, %v405
    %v568 = vpack.c.b16 %v408, %v406
    %v569 = vpack.c.b16 %v411, %v409
    %v570 = vpack.c.b16 %v412, %v410
    %v571 = vpack.c.b16 %v415, %v413
    %v572 = vpack.c.b16 %v416, %v414
    %v573 = vpack.c.b16 %v419, %v417
    %v574 = vpack.c.b16 %v420, %v418
    %v575 = vpack.c.b16 %v423, %v421
    %v576 = vpack.c.b16 %v424, %v422
    %v577 = vpack.c.b16 %v427, %v425
    %v578 = vpack.c.b16 %v428, %v426
    %v579 = vpack.c.b16 %v431, %v429
    %v580 = vpack.c.b16 %v432, %v430
    %v581 = vpack.c.b16 %v435, %v433
    %v582 = vpack.c.b16 %v436, %v434
    %v583 = vpack.c.b16 %v439, %v437
    %v584 = vpack.c.b16 %v440, %v438
    %v585 = vpack.c.b16 %v443, %v441
    %v586 = vpack.c.b16 %v444, %v442
    %v587 = vpack.c.b16 %v447, %v445
    %v588 = vpack.c.b16 %v448, %v446
    %v589 = vpack.c.b16 %v451, %v449
    %v590 = vpack.c.b16 %v452, %v450
    %v591 = vpack.c.b16 %v455, %v453
    %v592 = vpack.c.b16 %v456, %v454
    %v593 = vpack.c.b16 %v459, %v457
    %v594 = vpack.c.b16 %v460, %v458
    %v595 = vpack.c.b16 %v463, %v461
    %v596 = vpack.c.b16 %v464, %v462
    %v597 = vpack.c.b16 %v467, %v465
    %v598 = vpack.c.b16 %v468, %v466
    %v599 = vpack.c.b16 %v471, %v469
    %v600 = vpack.c.b16 %v472, %v470
    %v601 = vpack.c.b16 %v475, %v473
    %v602 = vpack.c.b16 %v476, %v474
    %v603 = vpack.c.b16 %v479, %v477
    %v604 = vpack.c.b16 %v480, %v478
    %v605 = vpack.c.b16 %v483, %v481
    %v606 = vpack.c.b16 %v484, %v482
    %v607 = vpack.c.b16 %v487, %v485
    %v608 = vpack.c.b16 %v488, %v486
    %v609 = vpack.c.b16 %v491, %v489
    %v610 = vpack.c.b16 %v492, %v490
    %v611 = vpack.c.b16 %v495, %v493
    %v612 = vpack.c.b16 %v496, %v494
    %v613 = vpack.c.b16 %v499, %v497
    %v614 = vpack.c.b16 %v500, %v498
    %v615 = vpack.c.b16 %v503, %v501
    %v616 = vpack.c.b16 %v504, %v502
    %v617 = vpack.c.b16 %v507, %v505
    %v618 = vpack.c.b16 %v508, %v506
    %v619 = vpack.c.b16 %v511, %v509
    %v620 = vpack.c.b16 %v512, %v510
    %v621 = vpack.c.b16 %v515, %v513
    %v622 = vpack.c.b16 %v516, %v514
    %v623 = vpack.c.b16 %v519, %v517
    %v624 = vpack.c.b16 %v520, %v518
    %v625 = vpack.c.b16 %v523, %v521
    %v626 = vpack.c.b16 %v524, %v522
    %v627 = vpack.c.b16 %v527, %v525
    %v628 = vpack.c.b16 %v528, %v526
    %v629 = vpack.c.b16 %v531, %v529
    %v630 = vpack.c.b16 %v532, %v530
    %vm729 = vcmask 130048
    %v731 = vsel %vm729, %v134, 0
    %733 = vmatpush.bf16.msra.mxu0 %v547
    %734 = vmatpush.bf16.msra.mxu0 %v545
    %735 = vmatpush.bf16.msra.mxu0 %v543
    %736 = vmatpush.bf16.msra.mxu0 %v541
    %737 = vmatpush.bf16.msra.mxu0 %v539
    %738 = vmatpush.bf16.msra.mxu0 %v537
    %739 = vmatpush.bf16.msra.mxu0 %v535
    %740 = vmatpush.bf16.msra.mxu0 %v533
    %741 = vmatmul.bf16.gmra.mxu0 %v128
    %v742 = vpop.f32.mrf.mxu0
    %v743 = vadd.f32 %v235, %v742
    %v744 = vpop.f32.mrf.mxu0
    %745 = vdwg.mxu0
    %746 = vmatpush.bf16.msra.mxu0 %v563
    %747 = vmatpush.bf16.msra.mxu0 %v561
    %748 = vmatpush.bf16.msra.mxu0 %v559
    %749 = vmatpush.bf16.msra.mxu0 %v557
    %750 = vmatpush.bf16.msra.mxu0 %v555
    %751 = vmatpush.bf16.msra.mxu0 %v553
    %752 = vmatpush.bf16.msra.mxu0 %v551
    %753 = vmatpush.bf16.msra.mxu0 %v549
    %754 = vmatmul.bf16.gmra.mxu0 %v129
    %v755 = vpop.f32.mrf.mxu0
    %v756 = vadd.f32 %v743, %v755
    %v757 = vpop.f32.mrf.mxu0
    %758 = vdwg.mxu0
    %759 = vmatpush.bf16.msra.mxu0 %v579
    %760 = vmatpush.bf16.msra.mxu0 %v577
    %761 = vmatpush.bf16.msra.mxu0 %v575
    %762 = vmatpush.bf16.msra.mxu0 %v573
    %763 = vmatpush.bf16.msra.mxu0 %v571
    %764 = vmatpush.bf16.msra.mxu0 %v569
    %765 = vmatpush.bf16.msra.mxu0 %v567
    %766 = vmatpush.bf16.msra.mxu0 %v565
    %767 = vmatmul.bf16.gmra.mxu0 %v130
    %v768 = vpop.f32.mrf.mxu0
    %v769 = vadd.f32 %v756, %v768
    %v770 = vpop.f32.mrf.mxu0
    %771 = vdwg.mxu0
    %772 = vmatpush.bf16.msra.mxu0 %v595
    %773 = vmatpush.bf16.msra.mxu0 %v593
    %774 = vmatpush.bf16.msra.mxu0 %v591
    %775 = vmatpush.bf16.msra.mxu0 %v589
    %776 = vmatpush.bf16.msra.mxu0 %v587
    %777 = vmatpush.bf16.msra.mxu0 %v585
    %778 = vmatpush.bf16.msra.mxu0 %v583
    %779 = vmatpush.bf16.msra.mxu0 %v581
    %780 = vmatmul.bf16.gmra.mxu0 %v131
    %v781 = vpop.f32.mrf.mxu0
    %v782 = vadd.f32 %v769, %v781
    %v783 = vpop.f32.mrf.mxu0
    %784 = vdwg.mxu0
    %785 = vmatpush.bf16.msra.mxu0 %v611
    %786 = vmatpush.bf16.msra.mxu0 %v609
    %787 = vmatpush.bf16.msra.mxu0 %v607
    %788 = vmatpush.bf16.msra.mxu0 %v605
    %789 = vmatpush.bf16.msra.mxu0 %v603
    %790 = vmatpush.bf16.msra.mxu0 %v601
    %791 = vmatpush.bf16.msra.mxu0 %v599
    %792 = vmatpush.bf16.msra.mxu0 %v597
    %793 = vmatmul.bf16.gmra.mxu0 %v132
    %v794 = vpop.f32.mrf.mxu0
    %v795 = vadd.f32 %v782, %v794
    %v796 = vpop.f32.mrf.mxu0
    %797 = vdwg.mxu0
    %798 = vmatpush.bf16.msra.mxu0 %v627
    %799 = vmatpush.bf16.msra.mxu0 %v625
    %800 = vmatpush.bf16.msra.mxu0 %v623
    %801 = vmatpush.bf16.msra.mxu0 %v621
    %802 = vmatpush.bf16.msra.mxu0 %v619
    %803 = vmatpush.bf16.msra.mxu0 %v617
    %804 = vmatpush.bf16.msra.mxu0 %v615
    %805 = vmatpush.bf16.msra.mxu0 %v613
    %806 = vmatmul.bf16.gmra.mxu0 %v133
    %v807 = vpop.f32.mrf.mxu0
    %v808 = vadd.f32 %v795, %v807
    %v809 = vpop.f32.mrf.mxu0
    %810 = vdwg.mxu0
    %811 = vmatpush.bf16.msra.mxu0 0
    %812 = vmatpush.bf16.msra.mxu0 0
    %813 = vmatpush.bf16.msra.mxu0 0
    %814 = vmatpush.bf16.msra.mxu0 0
    %815 = vmatpush.bf16.msra.mxu0 0
    %816 = vmatpush.bf16.msra.mxu0 0
    %817 = vmatpush.bf16.msra.mxu0 0
    %818 = vmatpush.bf16.msra.mxu0 %v629
    %819 = vmatmul.bf16.gmra.mxu0 %v731
    %v820 = vpop.f32.mrf.mxu0
    %v821 = vadd.f32 %v808, %v820
    %v822 = vpop.f32.mrf.mxu0
    %823 = vdwg.mxu0
    %824 = vmatpush.bf16.msra.mxu0 %v548
    %825 = vmatpush.bf16.msra.mxu0 %v546
    %826 = vmatpush.bf16.msra.mxu0 %v544
    %827 = vmatpush.bf16.msra.mxu0 %v542
    %828 = vmatpush.bf16.msra.mxu0 %v540
    %829 = vmatpush.bf16.msra.mxu0 %v538
    %830 = vmatpush.bf16.msra.mxu0 %v536
    %831 = vmatpush.bf16.msra.mxu0 %v534
    %832 = vmatmul.bf16.gmra.mxu0 %v128
    %v833 = vpop.f32.mrf.mxu0
    %v834 = vadd.f32 %v236, %v833
    %v835 = vpop.f32.mrf.mxu0
    %836 = vdwg.mxu0
    %837 = vmatpush.bf16.msra.mxu0 %v564
    %838 = vmatpush.bf16.msra.mxu0 %v562
    %839 = vmatpush.bf16.msra.mxu0 %v560
    %840 = vmatpush.bf16.msra.mxu0 %v558
    %841 = vmatpush.bf16.msra.mxu0 %v556
    %842 = vmatpush.bf16.msra.mxu0 %v554
    %843 = vmatpush.bf16.msra.mxu0 %v552
    %844 = vmatpush.bf16.msra.mxu0 %v550
    %845 = vmatmul.bf16.gmra.mxu0 %v129
    %v846 = vpop.f32.mrf.mxu0
    %v847 = vadd.f32 %v834, %v846
    %v848 = vpop.f32.mrf.mxu0
    %849 = vdwg.mxu0
    %850 = vmatpush.bf16.msra.mxu0 %v580
    %851 = vmatpush.bf16.msra.mxu0 %v578
    %852 = vmatpush.bf16.msra.mxu0 %v576
    %853 = vmatpush.bf16.msra.mxu0 %v574
    %854 = vmatpush.bf16.msra.mxu0 %v572
    %855 = vmatpush.bf16.msra.mxu0 %v570
    %856 = vmatpush.bf16.msra.mxu0 %v568
    %857 = vmatpush.bf16.msra.mxu0 %v566
    %858 = vmatmul.bf16.gmra.mxu0 %v130
    %v859 = vpop.f32.mrf.mxu0
    %v860 = vadd.f32 %v847, %v859
    %v861 = vpop.f32.mrf.mxu0
    %862 = vdwg.mxu0
    %863 = vmatpush.bf16.msra.mxu0 %v596
    %864 = vmatpush.bf16.msra.mxu0 %v594
    %865 = vmatpush.bf16.msra.mxu0 %v592
    %866 = vmatpush.bf16.msra.mxu0 %v590
    %867 = vmatpush.bf16.msra.mxu0 %v588
    %868 = vmatpush.bf16.msra.mxu0 %v586
    %869 = vmatpush.bf16.msra.mxu0 %v584
    %870 = vmatpush.bf16.msra.mxu0 %v582
    %871 = vmatmul.bf16.gmra.mxu0 %v131
    %v872 = vpop.f32.mrf.mxu0
    %v873 = vadd.f32 %v860, %v872
    %v874 = vpop.f32.mrf.mxu0
    %875 = vdwg.mxu0
    %876 = vmatpush.bf16.msra.mxu0 %v612
    %877 = vmatpush.bf16.msra.mxu0 %v610
    %878 = vmatpush.bf16.msra.mxu0 %v608
    %879 = vmatpush.bf16.msra.mxu0 %v606
    %880 = vmatpush.bf16.msra.mxu0 %v604
    %881 = vmatpush.bf16.msra.mxu0 %v602
    %882 = vmatpush.bf16.msra.mxu0 %v600
    %883 = vmatpush.bf16.msra.mxu0 %v598
    %884 = vmatmul.bf16.gmra.mxu0 %v132
    %v885 = vpop.f32.mrf.mxu0
    %v886 = vadd.f32 %v873, %v885
    %v887 = vpop.f32.mrf.mxu0
    %888 = vdwg.mxu0
    %889 = vmatpush.bf16.msra.mxu0 %v628
    %890 = vmatpush.bf16.msra.mxu0 %v626
    %891 = vmatpush.bf16.msra.mxu0 %v624
    %892 = vmatpush.bf16.msra.mxu0 %v622
    %893 = vmatpush.bf16.msra.mxu0 %v620
    %894 = vmatpush.bf16.msra.mxu0 %v618
    %895 = vmatpush.bf16.msra.mxu0 %v616
    %896 = vmatpush.bf16.msra.mxu0 %v614
    %897 = vmatmul.bf16.gmra.mxu0 %v133
    %v898 = vpop.f32.mrf.mxu0
    %v899 = vadd.f32 %v886, %v898
    %v900 = vpop.f32.mrf.mxu0
    %901 = vdwg.mxu0
    %902 = vmatpush.bf16.msra.mxu0 0
    %903 = vmatpush.bf16.msra.mxu0 0
    %904 = vmatpush.bf16.msra.mxu0 0
    %905 = vmatpush.bf16.msra.mxu0 0
    %906 = vmatpush.bf16.msra.mxu0 0
    %907 = vmatpush.bf16.msra.mxu0 0
    %908 = vmatpush.bf16.msra.mxu0 0
    %909 = vmatpush.bf16.msra.mxu0 %v630
    %910 = vmatmul.bf16.gmra.mxu0 %v731
    %v911 = vpop.f32.mrf.mxu0
    %v912 = vadd.f32 %v899, %v911
    %v913 = vpop.f32.mrf.mxu0
    %914 = vdwg.mxu0
    %v915 = vmax.f32 %v821, 0.0
    %v916 = vmax.f32 %v912, 0.0
    %v917 = vpack.c.bf16 %v915, %v915
    %v918 = vpack.c.bf16 %v916, %v916
    %v919 = vld [vmem:[#allocation8] sm:$0xf]
    %v920 = vld [vmem:[#allocation8 + $0x4] sm:$0xf]
    %v921 = vld [vmem:[#allocation8 + $0x8] sm:$0xf]
    %v922 = vld [vmem:[#allocation8 + $0xc] sm:$0xf]
    %v923 = vld [vmem:[#allocation8 + $0x10] sm:$0xf]
    %v924 = vld [vmem:[#allocation8 + $0x14] sm:$0xf]
    %v925 = vld [vmem:[#allocation8 + $0x18] sm:$0xf]
    %v926 = vld [vmem:[#allocation8 + $0x1c] sm:$0xf]
    %v927 = vld [vmem:[#allocation8 + $0x20] sm:$0xf]
    %v928 = vld [vmem:[#allocation8 + $0x24] sm:$0xf]
    %v929 = vld [vmem:[#allocation8 + $0x28] sm:$0xf]
    %v930 = vld [vmem:[#allocation8 + $0x2c] sm:$0xf]
    %v931 = vld [vmem:[#allocation8 + $0x30] sm:$0xf]
    %v932 = vld [vmem:[#allocation8 + $0x34] sm:$0xf]
    %v933 = vld [vmem:[#allocation8 + $0x38] sm:$0xf]
    %v934 = vld [vmem:[#allocation8 + $0x3c] sm:$0xf]
    %v935 = vld [vmem:[#allocation8 + $0x40] sm:$0xf]
    %v936 = vld [vmem:[#allocation8 + $0x44] sm:$0xf]
    %v937 = vld [vmem:[#allocation8 + $0x48] sm:$0xf]
    %v938 = vld [vmem:[#allocation8 + $0x4c] sm:$0xf]
    %v939 = vld [vmem:[#allocation8 + $0x50] sm:$0xf]
    %v940 = vld [vmem:[#allocation8 + $0x54] sm:$0xf]
    %v941 = vld [vmem:[#allocation8 + $0x58] sm:$0xf]
    %v942 = vld [vmem:[#allocation8 + $0x5c] sm:$0xf]
    %v943 = vld [vmem:[#allocation8 + $0x60] sm:$0xf]
    %v944 = vld [vmem:[#allocation8 + $0x64] sm:$0xf]
    %v945 = vld [vmem:[#allocation8 + $0x68] sm:$0xf]
    %v946 = vld [vmem:[#allocation8 + $0x6c] sm:$0xf]
    %v947 = vld [vmem:[#allocation8 + $0x70] sm:$0xf]
    %v948 = vld [vmem:[#allocation8 + $0x74] sm:$0xf]
    %v949 = vld [vmem:[#allocation8 + $0x78] sm:$0xf]
    %v950 = vld [vmem:[#allocation8 + $0x7c] sm:$0xf]
    %v951 = vld [vmem:[%s4] sm:$0x1]
    %v953 = vperm.slane %v951, 0
    %v987 = vunpack.c.l.b16 %v919
    %v988 = vunpack.c.l.b16 %v920
    %v989 = vunpack.c.l.b16 %v921
    %v990 = vunpack.c.l.b16 %v922
    %v991 = vunpack.c.l.b16 %v923
    %v992 = vunpack.c.l.b16 %v924
    %v993 = vunpack.c.l.b16 %v925
    %v994 = vunpack.c.l.b16 %v926
    %v995 = vunpack.c.l.b16 %v927
    %v996 = vunpack.c.l.b16 %v928
    %v997 = vunpack.c.l.b16 %v929
    %v998 = vunpack.c.l.b16 %v930
    %v999 = vunpack.c.l.b16 %v931
    %v1000 = vunpack.c.l.b16 %v932
    %v1001 = vunpack.c.l.b16 %v933
    %v1002 = vunpack.c.l.b16 %v934
    %v1003 = vunpack.c.l.b16 %v935
    %v1004 = vunpack.c.l.b16 %v936
    %v1005 = vunpack.c.l.b16 %v937
    %v1006 = vunpack.c.l.b16 %v938
    %v1007 = vunpack.c.l.b16 %v939
    %v1008 = vunpack.c.l.b16 %v940
    %v1009 = vunpack.c.l.b16 %v941
    %v1010 = vunpack.c.l.b16 %v942
    %v1011 = vunpack.c.l.b16 %v943
    %v1012 = vunpack.c.l.b16 %v944
    %v1013 = vunpack.c.l.b16 %v945
    %v1014 = vunpack.c.l.b16 %v946
    %v1015 = vunpack.c.l.b16 %v947
    %v1016 = vunpack.c.l.b16 %v948
    %v1017 = vunpack.c.l.b16 %v949
    %v1018 = vunpack.c.l.b16 %v950
    %v1019 = vpack.c.b16 %v988, %v987
    %v1020 = vpack.c.b16 %v990, %v989
    %v1021 = vpack.c.b16 %v992, %v991
    %v1022 = vpack.c.b16 %v994, %v993
    %v1023 = vpack.c.b16 %v996, %v995
    %v1024 = vpack.c.b16 %v998, %v997
    %v1025 = vpack.c.b16 %v1000, %v999
    %v1026 = vpack.c.b16 %v1002, %v1001
    %v1027 = vpack.c.b16 %v1004, %v1003
    %v1028 = vpack.c.b16 %v1006, %v1005
    %v1029 = vpack.c.b16 %v1008, %v1007
    %v1030 = vpack.c.b16 %v1010, %v1009
    %v1031 = vpack.c.b16 %v1012, %v1011
    %v1032 = vpack.c.b16 %v1014, %v1013
    %v1033 = vpack.c.b16 %v1016, %v1015
    %v1034 = vpack.c.b16 %v1018, %v1017
    %1051 = vmatpush.bf16.msra.mxu0 %v1026
    %1052 = vmatpush.bf16.msra.mxu0 %v1025
    %1053 = vmatpush.bf16.msra.mxu0 %v1024
    %1054 = vmatpush.bf16.msra.mxu0 %v1023
    %1055 = vmatpush.bf16.msra.mxu0 %v1022
    %1056 = vmatpush.bf16.msra.mxu0 %v1021
    %1057 = vmatpush.bf16.msra.mxu0 %v1020
    %1058 = vmatpush.bf16.msra.mxu0 %v1019
    %1059 = vmatmul.bf16.gmra.mxu0 %v917
    %v1060 = vpop.f32.mrf.mxu0
    %v1061 = vadd.f32 %v953, %v1060
    %v1062 = vpop.f32.mrf.mxu0
    %1063 = vdwg.mxu0
    %1064 = vmatpush.bf16.msra.mxu0 %v1034
    %1065 = vmatpush.bf16.msra.mxu0 %v1033
    %1066 = vmatpush.bf16.msra.mxu0 %v1032
    %1067 = vmatpush.bf16.msra.mxu0 %v1031
    %1068 = vmatpush.bf16.msra.mxu0 %v1030
    %1069 = vmatpush.bf16.msra.mxu0 %v1029
    %1070 = vmatpush.bf16.msra.mxu0 %v1028
    %1071 = vmatpush.bf16.msra.mxu0 %v1027
    %1072 = vmatmul.bf16.gmra.mxu0 %v918
    %v1073 = vpop.f32.mrf.mxu0
    %v1074 = vadd.f32 %v1061, %v1073
    %v1075 = vpop.f32.mrf.mxu0
    %1076 = vdwg.mxu0
    %1077 = vmax.xlane.f32.xlu0 %v1074
    %v1078 = vpop.xlane.xlu0 %1077
    %v1079 = vsub.f32 %v1074, %v1078
    %v1080 = vmul.f32 %v1079, 1.442695
    %v1081 = vpow.pop %v1080
    %1082 = vadd.xlane.f32.xlu0 %v1081
    %v1083 = vpop.xlane.xlu0 %1082
    %v1084 = vrcp.pop %v1083
    %v1085 = vmul.f32 %v1083, %v1084
    %v1086 = vsub.f32 1.0, %v1085
    %v1087 = vmul.f32 %v1084, %v1086
    %v1088 = vadd.f32 %v1084, %v1087
    %vm1089 = vweird.f32 %v1083
    %vm1090 = vweird.f32 %v1084
    %vm1091 = vmor %vm1089, %vm1090
    %v1092 = vsel %vm1091, %v1084, %v1088
    %v1093 = vand.u32 2147483647, %v1083
    %vm1094 = vcmp.eq.f32.partialorder %v1093, 8.507059e+37
    %v1095 = vand.u32 %v1083, 2147483648
    %v1096 = vor.u32 1.1754944e-38, %v1095
    %v1097 = vsel %vm1094, %v1096, %v1092
    %v1098 = vmul.f32 %v1081, %v1097
    %1099 = vst [vmem:[#allocation10] sm:$0xff] %v1098
    // Predicated region
    $region38: #{tpu_custom_call.1} parent=1 // pred_check
      _
    $region39: #{tpu_custom_call.1} parent=1 // pred_check_branch
      %1101 = sbr.rel (0) target = $region41
    $region40: #{tpu_custom_call.1} parent=1 // pred_region
      %1103 = vsyncadd [#allocation4], 96
      %s1104 = sshll.u32 [#allocation10], 4
      %s1105 = int_to_ptr.vmem [resolvable:$true] %s1104
      %s1106 = sshll.u32 %s5, 4
      %s1107 = int_to_ptr.hbm [resolvable:$true] %s1106
      %1112 = dma.vmem_to_hbm [thread:$0]  %s1105, 32, %s1107, [#allocation4], 32, 32, 2
    $region41: #{tpu_custom_call.1} parent=1 // pred_fallthru
      _
    // Predicated region
    $region42: #{tpu_custom_call.1} parent=1 // pred_check
      _
    $region43: #{tpu_custom_call.1} parent=1 // pred_check_branch
      %1114 = sbr.rel (0) target = $region45
    $region44: #{tpu_custom_call.1} parent=1 // pred_region
      %1116 = dma.done [#allocation4], 128
    $region45: #{tpu_custom_call.1} parent=1 // pred_fallthru
      _
    %1117 = vsyncpa [#allocation3], 1
    %1118 = vsyncpa [#allocation6], 1
    %1119 = vsyncpa [#allocation9], 1
    %1120 = vsyncpa [#allocation4], 1

</llo_original>
